<compile_context>
chip_gen: v7x
topology: tpu7x:2x2x1
jax: 0.10.0
libtpu: 0.0.40
codegen_flags: <defaults>
</compile_context>

<pallas_src>
import functools
import math

import jax
import jax.numpy as jnp
from jax import lax
from jax.experimental import pallas as pl
from jax.experimental.pallas import tpu as pltpu


def _redropout_kernel(seed_ref, x_ref, o_ref, *, threshold, scale, block_rows, cols):
    """One (block_rows, cols) tile of redrop.

    seed_ref: SMEM int32[1]; x_ref/o_ref: VMEM tiles of identical shape.
    """
    x = x_ref[...]

    # ---- counter-based PRNG: unique 32-bit counter per element -----------
    row = lax.broadcasted_iota(jnp.int32, x.shape, 0)
    col = lax.broadcasted_iota(jnp.int32, x.shape, 1)
    base = pl.program_id(0) * block_rows                 # scalar row offset
    idx = (base + row) * cols + col                      # global flat index
    h = idx.astype(jnp.uint32)

    # Seed mixing is scalar work (hoisted off the vector path).
    seed_mix = (seed_ref[0].astype(jnp.uint32) * jnp.uint32(0x9E3779B9)
                + jnp.uint32(0x85EBCA6B))
    h = h ^ seed_mix

    # lowbias32-style finalizer: good avalanche for sequential counters.
    h = h ^ (h >> 16)
    h = h * jnp.uint32(0x7FEB352D)
    h = h ^ (h >> 15)
    h = h * jnp.uint32(0x846CA68B)
    h = h ^ (h >> 16)

    # keep with probability (1 - rate): direct uint32 threshold compare.
    keep = h >= jnp.uint32(threshold)

    # redrop: dropout(x + 1) - 1  ==  where(keep, x*scale + (scale-1), -1)
    # Compute in the input dtype (no f32 round-trip for bf16 inputs).
    kept = x * jnp.asarray(scale, x.dtype) + jnp.asarray(scale - 1.0, x.dtype)
    o_ref[...] = jnp.where(keep, kept, jnp.asarray(-1.0, x.dtype))


def redropout(x, rate, seed, training=True):
    """Pallas implementation of ReDropout.forward (dropout(x + 1) - 1)."""
    if (not training) or rate == 0.0:
        return x  # nn.Dropout is the identity in eval mode / rate == 0
    if rate >= 1.0:
        return jnp.full_like(x, -1.0)  # dropout(x+1) is identically zero

    orig_shape = x.shape
    dtype = x.dtype
    n = math.prod(orig_shape)

    # Lane-dense layout: last dim a multiple of 128 (pad only if unavoidable).
    lanes = next((c for c in (1024, 512, 256, 128) if n % c == 0), 128)
    n_pad = pl.cdiv(n, lanes) * lanes
    flat = x.reshape(-1)
    if n_pad != n:
        flat = jnp.pad(flat, (0, n_pad - n))
    rows = n_pad // lanes
    x2 = flat.reshape(rows, lanes)

    # ~2 MiB per block -> (in + out) x double buffering ~ 8 MiB VMEM.
    bytes_per_row = lanes * x2.dtype.itemsize
    tile_rows = max(8, (2 * 1024 * 1024) // bytes_per_row)
    if tile_rows >= rows:
        tile_rows = rows  # single block along rows (block == full dim is OK)
    grid = (pl.cdiv(rows, tile_rows),)

    threshold = min(int(round(rate * (1 << 32))), (1 << 32) - 1)
    scale = 1.0 / (1.0 - rate)

    seed_arr = jnp.asarray([seed], dtype=jnp.int32)

    kernel = functools.partial(
        _redropout_kernel,
        threshold=threshold,
        scale=scale,
        block_rows=tile_rows,
        cols=lanes,
    )

    out2 = pl.pallas_call(
        kernel,
        out_shape=jax.ShapeDtypeStruct(x2.shape, dtype),
        grid=grid,
        in_specs=[
            pl.BlockSpec(memory_space=pltpu.MemorySpace.SMEM),      # seed scalar
            pl.BlockSpec((tile_rows, lanes), lambda i: (i, 0)),     # x tile
        ],
        out_specs=pl.BlockSpec((tile_rows, lanes), lambda i: (i, 0)),
        compiler_params=pltpu.CompilerParams(
            dimension_semantics=("parallel",)),                     # megacore on v7x
    )(seed_arr, x2)

    out_flat = out2.reshape(-1)
    if n_pad != n:
        out_flat = out_flat[:n]
    return out_flat.reshape(orig_shape)


if __name__ == "__main__":
    rate = 0.5
    key = jax.random.PRNGKey(0)
    x = jax.random.normal(key, (2, 4, 16, 16), dtype=jnp.float32)

    out = jax.block_until_ready(redropout(x, rate=rate, seed=1234, training=True))

    # Every element is either "dropped" (== -1 exactly) or "kept"
    # ((x+1)/(1-rate) - 1, up to fp reassociation of the folded form).
    scale = 1.0 / (1.0 - rate)
    kept_expected = (x + 1.0) * scale - 1.0
    dropped = jnp.isclose(out, -1.0, atol=1e-6)
    kept_ok = jnp.isclose(out, kept_expected, rtol=1e-5, atol=1e-5)
    assert bool(jnp.all(dropped | kept_ok)), "output mismatch"

    # Drop fraction should be in a loose band around `rate`.
    frac = float(jnp.mean(dropped.astype(jnp.float32)))
    assert 0.35 < frac < 0.65, f"unexpected drop fraction {frac}"

    # Eval-mode path is the identity.
    out_eval = jax.block_until_ready(redropout(x, rate=rate, seed=0, training=False))
    assert bool(jnp.all(out_eval == x))

    print("KERNEL_OK")
</pallas_src>

<mosaic_0001>
module attributes {stable_mosaic.version = 11 : i64} {
  func.func @_redropout_kernel(%arg0: i32, %arg1: memref<1xi32, #tpu.memory_space<smem>>, %arg2: memref<2x1024xf32, #tpu.memory_space<vmem>>, %arg3: memref<2x1024xf32, #tpu.memory_space<vmem>>) attributes {dimension_semantics = [#tpu.dimension_semantics<parallel>], iteration_bounds = array<i64: 1>, scalar_prefetch = 0 : i64, scratch_operands = 0 : i64, tpu.core_type = #tpu.core_type<tc>, window_params = [{transform_indices = @transform_0, window_bounds = array<i64: 1>}, {transform_indices = @transform_1, window_bounds = array<i64: 2, 1024>}, {transform_indices = @transform_2, window_bounds = array<i64: 2, 1024>}]} {
    %c0 = arith.constant 0 : index
    %c0_0 = arith.constant 0 : index
    %0 = vector.load %arg2[%c0, %c0_0] : memref<2x1024xf32, #tpu.memory_space<vmem>>, vector<2x1024xf32>
    %1 = tpu.iota {dimensions = array<i32: 0>} : vector<2x1024xi32>
    %2 = tpu.iota {dimensions = array<i32: 1>} : vector<2x1024xi32>
    %c2_i32 = arith.constant 2 : i32
    %3 = arith.muli %arg0, %c2_i32 : i32
    %4 = vector.broadcast %3 : i32 to vector<2x1024xi32>
    %5 = arith.addi %4, %1 : vector<2x1024xi32>
    %c1024_i32 = arith.constant 1024 : i32
    %6 = vector.broadcast %c1024_i32 : i32 to vector<2x1024xi32>
    %7 = arith.muli %5, %6 : vector<2x1024xi32>
    %8 = arith.addi %7, %2 : vector<2x1024xi32>
    %c0_1 = arith.constant 0 : index
    %9 = memref.load %arg1[%c0_1] : memref<1xi32, #tpu.memory_space<smem>>
    %c-1640531527_i32 = arith.constant -1640531527 : i32
    %10 = arith.muli %9, %c-1640531527_i32 : i32
    %c-2048144789_i32 = arith.constant -2048144789 : i32
    %11 = arith.addi %10, %c-2048144789_i32 : i32
    %12 = vector.broadcast %11 : i32 to vector<2x1024xi32>
    %13 = arith.xori %8, %12 : vector<2x1024xi32>
    %c16_i32 = arith.constant 16 : i32
    %14 = vector.broadcast %c16_i32 : i32 to vector<2x1024xi32>
    %15 = arith.shrui %13, %14 : vector<2x1024xi32>
    %16 = arith.xori %13, %15 : vector<2x1024xi32>
    %c2146121005_i32 = arith.constant 2146121005 : i32
    %17 = vector.broadcast %c2146121005_i32 : i32 to vector<2x1024xi32>
    %18 = arith.muli %16, %17 : vector<2x1024xi32>
    %c15_i32 = arith.constant 15 : i32
    %19 = vector.broadcast %c15_i32 : i32 to vector<2x1024xi32>
    %20 = arith.shrui %18, %19 : vector<2x1024xi32>
    %21 = arith.xori %18, %20 : vector<2x1024xi32>
    %c-2073254261_i32 = arith.constant -2073254261 : i32
    %22 = vector.broadcast %c-2073254261_i32 : i32 to vector<2x1024xi32>
    %23 = arith.muli %21, %22 : vector<2x1024xi32>
    %c16_i32_2 = arith.constant 16 : i32
    %24 = vector.broadcast %c16_i32_2 : i32 to vector<2x1024xi32>
    %25 = arith.shrui %23, %24 : vector<2x1024xi32>
    %26 = arith.xori %23, %25 : vector<2x1024xi32>
    %c-2147483648_i32 = arith.constant -2147483648 : i32
    %27 = vector.broadcast %c-2147483648_i32 : i32 to vector<2x1024xi32>
    %28 = arith.cmpi uge, %26, %27 : vector<2x1024xi32>
    %cst = arith.constant 2.000000e+00 : f32
    %29 = vector.broadcast %cst : f32 to vector<2x1024xf32>
    %30 = arith.mulf %0, %29 : vector<2x1024xf32>
    %cst_3 = arith.constant 1.000000e+00 : f32
    %31 = vector.broadcast %cst_3 : f32 to vector<2x1024xf32>
    %32 = arith.addf %30, %31 : vector<2x1024xf32>
    %cst_4 = arith.constant -1.000000e+00 : f32
    %33 = vector.broadcast %cst_4 : f32 to vector<2x1024xf32>
    %34 = arith.select %28, %32, %33 : vector<2x1024xi1>, vector<2x1024xf32>
    %c0_5 = arith.constant 0 : index
    %c0_6 = arith.constant 0 : index
    %35 = vector.load %arg3[%c0_5, %c0_6] : memref<2x1024xf32, #tpu.memory_space<vmem>>, vector<2x1024xf32>
    tpu.vector_store %arg3[%c0_5, %c0_6], %34 {strides = array<i32>} : memref<2x1024xf32, #tpu.memory_space<vmem>>, vector<2x1024xf32>,
    return
  }
  func.func @transform_0(%arg0: i32) -> i32 {
    %c0_i32 = arith.constant 0 : i32
    %c0_i32_0 = arith.constant 0 : i32
    return %c0_i32 : i32
  }
  func.func @transform_1(%arg0: i32) -> (i32, i32) {
    %c0_i32 = arith.constant 0 : i32
    %c0_i32_0 = arith.constant 0 : i32
    return %arg0, %c0_i32 : i32, i32
  }
  func.func @transform_2(%arg0: i32) -> (i32, i32) {
    %c0_i32 = arith.constant 0 : i32
    %c0_i32_0 = arith.constant 0 : i32
    return %arg0, %c0_i32 : i32, i32
  }
}

</mosaic_0001>

<llo_original>
// kernel: tpu_custom_call.1
$region0: #{tpu_custom_call.1}
  #allocation0 [shape = 'u32[]', space=smem, size = 0x4, offset = 0x4, fixed_abs, tag = 'smem constant byte address 0x4 - core index']
  #allocation1 [shape = 'u32[144,128]{1,0:T(1,128)}', space=vmem, size = 0x12000, scoped, tag = 'internal scratch']
  #allocation2 [shape = 's32[1]{0:T(128)S(6)}', space=smem, size = 0x200, scoped, tag = 'scoped memory for tpu_custom_call.1']
  %s0 = inlined_call_operand.<no memory space> [shape: s32[1], index: 0, kind: input, shape index: {}]
  %s1 = inlined_call_operand.hbm [shape: f32[2,1024], index: 1, kind: input, shape index: {}]
  %s2 = inlined_call_operand.hbm [shape: f32[2,1024], index: 2, kind: output, shape index: {}]
  %s3 = sld [smem:[#allocation0]]
  $region22: #{tpu_custom_call.1} parent=0
    _
  %s5 = ssub.s32 1, %s3
  %s6 = scalar_select 0, %s5, %s3
  %7 = sst [smem:[#allocation2]] %s0
  $region1: #{tpu_custom_call.1} parent=0
    #allocation3 [shape = 'u8[8192]{0}', space=vmem, size = 0x2000, scoped, tag = 'input window, operand 1, single buffered']
    #allocation4 [shape = 's32[1]{0}', space=sflag, size = 0x4, scoped, tag = 'scoped memory for tpu_custom_call.1']
    #allocation5 [shape = 's32[1]{0}', space=sflag, size = 0x4, scoped, tag = 'scoped memory for tpu_custom_call.1']
    #allocation6 [shape = 'u8[8192]{0}', space=vmem, size = 0x2000, scoped, tag = 'output window, operand 0, single buffered']
    %8 = vsyncpa [#allocation4], 0
    %9 = vsyncpa [#allocation5], 0
    // Predicated region
    $region2: #{tpu_custom_call.1} parent=1 // pred_check
      _
    $region3: #{tpu_custom_call.1} parent=1 // pred_check_branch
      %11 = sbr.rel (0) target = $region5
    $region4: #{tpu_custom_call.1} parent=1 // pred_region
      _
    $region5: #{tpu_custom_call.1} parent=1 // pred_fallthru
      _
    // Predicated region
    $region6: #{tpu_custom_call.1} parent=1 // pred_check
      _
    $region7: #{tpu_custom_call.1} parent=1 // pred_check_branch
      %13 = sbr.rel (0) target = $region9
    $region8: #{tpu_custom_call.1} parent=1 // pred_region
      %s15 = ssub.s32 256, 256
      %16 = vsyncadd [#allocation4], %s15
      %s18 = sshll.u32 [#allocation3], 4
      %s19 = int_to_ptr.vmem [resolvable:$true] %s18
      %21 = dma.hbm_to_vmem [thread:$0]  %s1, 256, %s19, [#allocation4]
    $region9: #{tpu_custom_call.1} parent=1 // pred_fallthru
      _
    // Predicated region
    $region10: #{tpu_custom_call.1} parent=1 // pred_check
      _
    $region11: #{tpu_custom_call.1} parent=1 // pred_check_branch
      %23 = sbr.rel (0) target = $region13
    $region12: #{tpu_custom_call.1} parent=1 // pred_region
      %24 = dma.done [#allocation4], 256
    $region13: #{tpu_custom_call.1} parent=1 // pred_fallthru
      _
    %v25 = vld [vmem:[#allocation3] sm:$0xff]
    %v26 = vld [vmem:[#allocation3 + $0x8] sm:$0xff]
    %v27 = vlaneseq
    %v28 = vshrl.u32 %v27, 7
    %v29 = vlaneseq
    %v30 = vand.u32 %v29, 127
    %v31 = vadd.s32 %v30, 128
    %v32 = vadd.s32 %v30, 256
    %v33 = vadd.s32 %v30, 384
    %v34 = vadd.s32 %v30, 512
    %v35 = vadd.s32 %v30, 640
    %v36 = vadd.s32 %v30, 768
    %v37 = vadd.s32 %v30, 896
    %s38 = smul.u32 0, 2
    %v39 = vstv %s38
    %v40 = vadd.s32 %v39, %v28
    %v41 = vmul.u32 %v40, 1024
    %v42 = vadd.s32 %v41, %v30
    %v43 = vadd.s32 %v41, %v31
    %v44 = vadd.s32 %v41, %v32
    %v45 = vadd.s32 %v41, %v33
    %v46 = vadd.s32 %v41, %v34
    %v47 = vadd.s32 %v41, %v35
    %v48 = vadd.s32 %v41, %v36
    %v49 = vadd.s32 %v41, %v37
    %s50 = sld [smem:[#allocation2]]
    %s51 = smul.u32 %s50, 2654435769
    %s52 = sadd.s32 %s51, 2246822507
    %v53 = vstv %s52
    %v54 = vxor.u32 %v42, %v53
    %v55 = vxor.u32 %v43, %v53
    %v56 = vxor.u32 %v44, %v53
    %v57 = vxor.u32 %v45, %v53
    %v58 = vxor.u32 %v46, %v53
    %v59 = vxor.u32 %v47, %v53
    %v60 = vxor.u32 %v48, %v53
    %v61 = vxor.u32 %v49, %v53
    %v62 = vshrl.u32 %v54, 16
    %v63 = vshrl.u32 %v55, 16
    %v64 = vshrl.u32 %v56, 16
    %v65 = vshrl.u32 %v57, 16
    %v66 = vshrl.u32 %v58, 16
    %v67 = vshrl.u32 %v59, 16
    %v68 = vshrl.u32 %v60, 16
    %v69 = vshrl.u32 %v61, 16
    %v70 = vxor.u32 %v54, %v62
    %v71 = vxor.u32 %v55, %v63
    %v72 = vxor.u32 %v56, %v64
    %v73 = vxor.u32 %v57, %v65
    %v74 = vxor.u32 %v58, %v66
    %v75 = vxor.u32 %v59, %v67
    %v76 = vxor.u32 %v60, %v68
    %v77 = vxor.u32 %v61, %v69
    %v78 = vmul.u32 %v70, 2146121005
    %v79 = vmul.u32 %v71, 2146121005
    %v80 = vmul.u32 %v72, 2146121005
    %v81 = vmul.u32 %v73, 2146121005
    %v82 = vmul.u32 %v74, 2146121005
    %v83 = vmul.u32 %v75, 2146121005
    %v84 = vmul.u32 %v76, 2146121005
    %v85 = vmul.u32 %v77, 2146121005
    %v86 = vshrl.u32 %v78, 15
    %v87 = vshrl.u32 %v79, 15
    %v88 = vshrl.u32 %v80, 15
    %v89 = vshrl.u32 %v81, 15
    %v90 = vshrl.u32 %v82, 15
    %v91 = vshrl.u32 %v83, 15
    %v92 = vshrl.u32 %v84, 15
    %v93 = vshrl.u32 %v85, 15
    %v94 = vxor.u32 %v78, %v86
    %v95 = vxor.u32 %v79, %v87
    %v96 = vxor.u32 %v80, %v88
    %v97 = vxor.u32 %v81, %v89
    %v98 = vxor.u32 %v82, %v90
    %v99 = vxor.u32 %v83, %v91
    %v100 = vxor.u32 %v84, %v92
    %v101 = vxor.u32 %v85, %v93
    %v102 = vmul.u32 %v94, 2221713035
    %v103 = vmul.u32 %v95, 2221713035
    %v104 = vmul.u32 %v96, 2221713035
    %v105 = vmul.u32 %v97, 2221713035
    %v106 = vmul.u32 %v98, 2221713035
    %v107 = vmul.u32 %v99, 2221713035
    %v108 = vmul.u32 %v100, 2221713035
    %v109 = vmul.u32 %v101, 2221713035
    %v110 = vshrl.u32 %v102, 16
    %v111 = vshrl.u32 %v103, 16
    %v112 = vshrl.u32 %v104, 16
    %v113 = vshrl.u32 %v105, 16
    %v114 = vshrl.u32 %v106, 16
    %v115 = vshrl.u32 %v107, 16
    %v116 = vshrl.u32 %v108, 16
    %v117 = vshrl.u32 %v109, 16
    %v118 = vxor.u32 %v102, %v110
    %v119 = vxor.u32 %v103, %v111
    %v120 = vxor.u32 %v104, %v112
    %v121 = vxor.u32 %v105, %v113
    %v122 = vxor.u32 %v106, %v114
    %v123 = vxor.u32 %v107, %v115
    %v124 = vxor.u32 %v108, %v116
    %v125 = vxor.u32 %v109, %v117
    %vm126 = vcmp.ge.u32.totalorder %v118, 2147483648
    %vm127 = vcmp.ge.u32.totalorder %v119, 2147483648
    %vm128 = vcmp.ge.u32.totalorder %v120, 2147483648
    %vm129 = vcmp.ge.u32.totalorder %v121, 2147483648
    %vm130 = vcmp.ge.u32.totalorder %v122, 2147483648
    %vm131 = vcmp.ge.u32.totalorder %v123, 2147483648
    %vm132 = vcmp.ge.u32.totalorder %v124, 2147483648
    %vm133 = vcmp.ge.u32.totalorder %v125, 2147483648
    %v134 = vmul.f32 %v25, 2.0
    %v135 = vmul.f32 %v26, 2.0
    %v136 = vadd.f32 %v134, 1.0
    %v137 = vadd.f32 %v135, 1.0
    %v140 = vcombine.high %v136, %v136
    %v142 = vunpack.c.l.s4 1983009808
    %v143 = vunpack.c.0.s8 %v142
    %v144 = vlaneseq
    %v145 = vshrl.u32 %v144, 7
    %v146 = vsub.s32 %v143, %v145
    %v147 = vrot.slane %v136, %v146
    %v149 = vunpack.c.l.s4 1983009808
    %v150 = vunpack.c.0.s8 %v149
    %v151 = vlaneseq
    %v152 = vshrl.u32 %v151, 7
    %v153 = vsub.s32 %v150, %v152
    %v154 = vrot.slane %v140, %v153
    %v155 = vcombine.high %v147, %v147
    %v156 = vcombine.high %v154, %v154
    %v157 = vcombine.high %v137, %v137
    %v159 = vunpack.c.l.s4 1983009808
    %v160 = vunpack.c.0.s8 %v159
    %v161 = vlaneseq
    %v162 = vshrl.u32 %v161, 7
    %v163 = vsub.s32 %v160, %v162
    %v164 = vrot.slane %v137, %v163
    %v166 = vunpack.c.l.s4 1983009808
    %v167 = vunpack.c.0.s8 %v166
    %v168 = vlaneseq
    %v169 = vshrl.u32 %v168, 7
    %v170 = vsub.s32 %v167, %v169
    %v171 = vrot.slane %v157, %v170
    %v172 = vcombine.high %v164, %v164
    %v173 = vcombine.high %v171, %v171
    %v182 = vsel %vm126, %v147, -1.0
    %v183 = vsel %vm127, %v155, -1.0
    %v184 = vsel %vm128, %v154, -1.0
    %v185 = vsel %vm129, %v156, -1.0
    %v186 = vsel %vm130, %v164, -1.0
    %v187 = vsel %vm131, %v172, -1.0
    %v188 = vsel %vm132, %v171, -1.0
    %v189 = vsel %vm133, %v173, -1.0
    %v198 = vcombine.low %v182, %v183
    %v199 = vcombine.low %v184, %v185
    %v201 = vunpack.c.l.s4 1983009808
    %v202 = vunpack.c.0.s8 %v201
    %v203 = vlaneseq
    %v204 = vshrl.u32 %v203, 7
    %v205 = vsub.s32 %v202, %v204
    %v206 = vrot.slane %v198, %v205
    %v208 = vunpack.c.l.s4 1983009808
    %v209 = vunpack.c.0.s8 %v208
    %v210 = vlaneseq
    %v211 = vshrl.u32 %v210, 7
    %v212 = vsub.s32 %v209, %v211
    %v213 = vrot.slane %v199, %v212
    %v214 = vcombine.low %v206, %v213
    %v215 = vcombine.low %v186, %v187
    %v216 = vcombine.low %v188, %v189
    %v218 = vunpack.c.l.s4 1983009808
    %v219 = vunpack.c.0.s8 %v218
    %v220 = vlaneseq
    %v221 = vshrl.u32 %v220, 7
    %v222 = vsub.s32 %v219, %v221
    %v223 = vrot.slane %v215, %v222
    %v225 = vunpack.c.l.s4 1983009808
    %v226 = vunpack.c.0.s8 %v225
    %v227 = vlaneseq
    %v228 = vshrl.u32 %v227, 7
    %v229 = vsub.s32 %v226, %v228
    %v230 = vrot.slane %v216, %v229
    %v231 = vcombine.low %v223, %v230
    %234 = vst [vmem:[#allocation6] sm:$0xff] %v214
    %235 = vst [vmem:[#allocation6 + $0x8] sm:$0xff] %v231
    // Predicated region
    $region14: #{tpu_custom_call.1} parent=1 // pred_check
      _
    $region15: #{tpu_custom_call.1} parent=1 // pred_check_branch
      %237 = sbr.rel (0) target = $region17
    $region16: #{tpu_custom_call.1} parent=1 // pred_region
      %s239 = ssub.s32 256, 256
      %240 = vsyncadd [#allocation5], %s239
      %s242 = sshll.u32 [#allocation6], 4
      %s243 = int_to_ptr.vmem [resolvable:$true] %s242
      %245 = dma.vmem_to_hbm [thread:$0]  %s243, 256, %s2, [#allocation5]
    $region17: #{tpu_custom_call.1} parent=1 // pred_fallthru
      _
    // Predicated region
    $region18: #{tpu_custom_call.1} parent=1 // pred_check
      _
    $region19: #{tpu_custom_call.1} parent=1 // pred_check_branch
      %247 = sbr.rel (0) target = $region21
    $region20: #{tpu_custom_call.1} parent=1 // pred_region
      %248 = dma.done [#allocation5], 256
    $region21: #{tpu_custom_call.1} parent=1 // pred_fallthru
      _
    %249 = vsyncpa [#allocation4], 1
    %250 = vsyncpa [#allocation5], 1

</llo_original>
